<compile_context>
chip_gen: v6e
topology: v6e:2x2x1
jax: 0.10.0
libtpu: 0.0.40
codegen_flags: <defaults>
</compile_context>

<pallas_src>
import functools

import jax
import jax.numpy as jnp
from jax import lax
from jax.experimental import pallas as pl
from jax.experimental.pallas import tpu as pltpu


_VMEM_CAP = 48 * 1024 * 1024   # v7x-safe working-set budget (64 MiB physical)
_EPS2 = 1e-24                  # (F.normalize default eps = 1e-12) ** 2


# --------------------------------------------------------------------------- #
# Prologue: row-wise L2 normalization of the embedding table (done once).
# --------------------------------------------------------------------------- #
def _rownorm_kernel(e_ref, o_ref):
    ev = e_ref[...].astype(jnp.float32)
    inv = lax.rsqrt(jnp.maximum(jnp.sum(ev * ev, axis=1, keepdims=True),
                                jnp.float32(_EPS2)))               # EUP rsqrt
    o_ref[...] = (ev * inv).astype(o_ref.dtype)


def _normalize_rows(e, out_dtype):
    C, D = e.shape
    out_isz = jnp.dtype(out_dtype).itemsize
    per_row = 2 * D * (e.dtype.itemsize + out_isz)    # double-buffered in+out
    pref = max(8, min(1024, (40 * 1024 * 1024) // max(per_row, 1)))
    tr = _pick_tile(C, pref)
    return pl.pallas_call(
        _rownorm_kernel,
        out_shape=jax.ShapeDtypeStruct((C, D), out_dtype),
        grid_spec=pltpu.PrefetchScalarGridSpec(
            num_scalar_prefetch=0,
            grid=(C // tr,),
            in_specs=[pl.BlockSpec((tr, D), lambda i: (i, 0))],
            out_specs=pl.BlockSpec((tr, D), lambda i: (i, 0)),
        ),
        compiler_params=pltpu.CompilerParams(
            dimension_semantics=("parallel",)),
    )(e)


# --------------------------------------------------------------------------- #
# Main kernel: tiled cosine logits + flash-style (fixed-max) softmax CE.
# --------------------------------------------------------------------------- #
def _gce_kernel(x_ref, emb_ref, lab_ref, o_ref,
                xn_ref, l_ref, corr_ref, *, exp_dtype):
    """One (B-tile, C-tile) grid step.  emb_ref is already L2-normalized."""
    c = pl.program_id(1)
    last_c = pl.num_programs(1) - 1
    tb = x_ref.shape[0]
    tc = emb_ref.shape[0]

    # --- per-B-tile init: normalize x once, reset softmax state --------------
    @pl.when(c == 0)
    def _init():
        xv = x_ref[...].astype(jnp.float32)
        inv_x = lax.rsqrt(jnp.maximum(jnp.sum(xv * xv, axis=1, keepdims=True),
                                      jnp.float32(_EPS2)))
        xn_ref[...] = (xv * inv_x).astype(xn_ref.dtype)
        l_ref[...] = jnp.zeros_like(l_ref)
        corr_ref[...] = jnp.zeros_like(corr_ref)

    # cosine = xn @ en.T via (1,1)-contraction dot_general (no transpose of the
    # embedding tile); bf16/f32 inputs, f32 MXU accumulate.
    cosine = lax.dot_general(
        xn_ref[...], emb_ref[...],
        dimension_numbers=(((1,), (1,)), ((), ())),
        preferred_element_type=jnp.float32)                        # (tb, tc)

    # --- softmax exp-sum with a *fixed* max of 1.0 (cosine <= 1, exact) ------
    shifted = cosine - 1.0
    if jnp.dtype(exp_dtype) == jnp.dtype(jnp.float32):
        e = jnp.exp(shifted)
    else:
        # bf16 EUP exp on v6e/v7x (~2x throughput); row sum accumulates in f32.
        e = jnp.exp(shifted.astype(exp_dtype)).astype(jnp.float32)
    l_ref[...] += jnp.sum(e, axis=1, keepdims=True)

    # --- gather the correct-class logit (no dense one_hot / log_softmax) -----
    lab = lab_ref[...]                                             # (tb,1) i32
    class_idx = lax.broadcasted_iota(jnp.int32, (tb, tc), 1) + c * tc
    corr_ref[...] += jnp.sum(jnp.where(class_idx == lab, cosine, 0.0),
                             axis=1, keepdims=True)

    # --- finalize: per-example NLL = 1 + log(l) - corr ------------------------
    @pl.when(c == last_c)
    def _finalize():
        o_ref[...] = 1.0 + jnp.log(l_ref[...]) - corr_ref[...]


# --------------------------------------------------------------------------- #
# Tile / VMEM helpers.
# --------------------------------------------------------------------------- #
def _pick_tile(n, preferred, aligns=(256, 128, 8)):
    """Largest divisor of n <= preferred that is a multiple of an alignment
    (256 first: full v6e/v7x MXU tiles); falls back to the full extent n."""
    preferred = max(1, min(preferred, n))
    if preferred >= n:
        return n
    for align in aligns:
        if n % align != 0 or preferred < align:
            continue
        t = (preferred // align) * align
        while t >= align:
            if n % t == 0:
                return t
            t -= align
    return n


def _vmem_estimate(tb, tc, D, m_isz, e_isz):
    """Working-set estimate incl. the in-kernel (tb, tc) temporaries."""
    lane = 128
    narrow = tb * lane * 4                        # (tb,1) blocks pad to 128 lanes
    blocks = 2 * (tb * D * 4                      # x block (f32), double-buffered
                  + tc * D * m_isz                # pre-normalized embedding block
                  + 2 * narrow)                   # labels + NLL output blocks
    scratch = tb * D * m_isz + 2 * narrow         # xn cache + l/corr
    temps = tb * tc * (4 * 4 + e_isz)             # cosine/shift/iota/mask + exp
    return blocks + scratch + temps


def _choose_tiles(B, C, D, tb_req, tc_req, m_isz, e_isz):
    tb_cands = ([tb_req] if tb_req is not None
                else [B, 2048, 1024, 512, 256, 128, 64, 32, 16, 8])
    tc_cands = ([tc_req] if tc_req is not None
                else [4096, 2048, 1024, 512, 256, 128])
    for tbp in tb_cands:
        tbv = _pick_tile(B, tbp)
        for tcp in tc_cands:
            tcv = _pick_tile(C, tcp)
            if _vmem_estimate(tbv, tcv, D, m_isz, e_isz) <= _VMEM_CAP:
                return tbv, tcv
    return _pick_tile(B, tb_cands[-1]), _pick_tile(C, tc_cands[-1])


def _has_bf16_vector_units():
    # bf16 VPU/EUP exists on v6e/v7x; v5e (and older) keep f32 vector math.
    try:
        kind = jax.devices()[0].device_kind.lower()
    except Exception:
        return False
    return ("v6" in kind) or ("v7" in kind)


# --------------------------------------------------------------------------- #
# Public wrapper.
# --------------------------------------------------------------------------- #
def gce_loss(x, embedding, labels, *, tb=None, tc=None,
             matmul_dtype=jnp.float32, exp_dtype=None):
    """x: (B, D), embedding: (C, D), labels: (B,) int -> scalar loss.

    matmul_dtype=jnp.bfloat16 is the production path: bf16 MXU inputs / f32
    accumulate and a halved embedding HBM stream (~1e-3-level numerics change).
    """
    B, D = x.shape
    C, D2 = embedding.shape
    assert D == D2, (x.shape, embedding.shape)

    matmul_dtype = jnp.dtype(matmul_dtype)
    if exp_dtype is None:
        exp_dtype = (jnp.dtype(jnp.bfloat16)
                     if (matmul_dtype == jnp.dtype(jnp.bfloat16)
                         and _has_bf16_vector_units())
                     else jnp.dtype(jnp.float32))
    else:
        exp_dtype = jnp.dtype(exp_dtype)

    lab2d = labels.reshape(B, 1).astype(jnp.int32)

    # Prologue: embedding normalized once, already in the MXU dtype.
    emb_n = _normalize_rows(embedding, matmul_dtype)

    tb, tc = _choose_tiles(B, C, D, tb, tc, matmul_dtype.itemsize,
                           exp_dtype.itemsize)
    nb, nc = B // tb, C // tc

    est = _vmem_estimate(tb, tc, D, matmul_dtype.itemsize, exp_dtype.itemsize)
    vmem_limit = int(min(max(est * 3 // 2, 32 * 1024 * 1024),
                         56 * 1024 * 1024))

    kernel = functools.partial(_gce_kernel, exp_dtype=exp_dtype)

    nll = pl.pallas_call(
        kernel,
        out_shape=jax.ShapeDtypeStruct((B, 1), jnp.float32),
        grid_spec=pltpu.PrefetchScalarGridSpec(
            num_scalar_prefetch=0,
            grid=(nb, nc),
            in_specs=[
                pl.BlockSpec((tb, D), lambda b, c: (b, 0)),   # x tile
                pl.BlockSpec((tc, D), lambda b, c: (c, 0)),   # normalized emb
                pl.BlockSpec((tb, 1), lambda b, c: (b, 0)),   # labels tile
            ],
            out_specs=pl.BlockSpec((tb, 1), lambda b, c: (b, 0)),
            scratch_shapes=[
                pltpu.VMEM((tb, D), matmul_dtype),   # normalized x (cached)
                pltpu.VMEM((tb, 1), jnp.float32),    # running exp-sum l
                pltpu.VMEM((tb, 1), jnp.float32),    # correct-class logit
            ],
        ),
        compiler_params=pltpu.CompilerParams(
            dimension_semantics=("parallel", "arbitrary"),
            vmem_limit_bytes=vmem_limit,
        ),
    )(x, emb_n, lab2d)

    # Mean over the *global* batch size (B tiling does not change it).
    return jnp.sum(nll) / jnp.float32(B)


def gce_loss_ref(x, embedding, labels):
    """Pure-JAX reference for correctness checking."""
    eps = 1e-12
    xn = x / jnp.maximum(jnp.linalg.norm(x, axis=1, keepdims=True), eps)
    en = embedding / jnp.maximum(
        jnp.linalg.norm(embedding, axis=1, keepdims=True), eps)
    cosine = xn @ en.T
    log_sm = jax.nn.log_softmax(cosine, axis=1)
    one_hot = jax.nn.one_hot(labels, embedding.shape[0], dtype=jnp.float32)
    return -jnp.mean(jnp.sum(one_hot * log_sm, axis=1))


if __name__ == "__main__":
    # Small shapes consistent with the module: in_features=128, num_classes=256,
    # batch=16.
    B, D, C = 16, 128, 256
    key = jax.random.PRNGKey(0)
    kx, ke, kl = jax.random.split(key, 3)

    x = jax.random.normal(kx, (B, D), dtype=jnp.float32)
    embedding = jax.random.normal(ke, (C, D), dtype=jnp.float32)  # N(0,1) init
    labels = jax.random.randint(kl, (B,), 0, C, dtype=jnp.int32)

    ref = gce_loss_ref(x, embedding, labels)

    # 1) f32 MXU path with an explicit (2, 2) grid -> exercises the C-tiled
    #    exp-sum accumulation and per-B-tile scratch reset.
    loss = gce_loss(x, embedding, labels, tb=8, tc=128)
    jax.block_until_ready(loss)
    assert jnp.allclose(loss, ref, atol=1e-4, rtol=1e-4), (loss, ref)

    # 2) default tiles (tb=B, large tc -> single grid step at these shapes;
    #    embedding streamed from HBM exactly once).
    loss_d = gce_loss(x, embedding, labels)
    jax.block_until_ready(loss_d)
    assert jnp.allclose(loss_d, ref, atol=1e-4, rtol=1e-4), (loss_d, ref)

    # 3) bf16-input / f32-accumulate MXU path (production setting, bf16 exp on
    #    v6e/v7x); relaxed tolerance for the bf16 numerics tradeoff.
    loss_bf16 = gce_loss(x, embedding, labels, tb=8, tc=128,
                         matmul_dtype=jnp.bfloat16)
    jax.block_until_ready(loss_bf16)
    assert jnp.allclose(loss_bf16, ref, atol=2e-2, rtol=2e-2), (loss_bf16, ref)

    print("KERNEL_OK")
</pallas_src>

<mosaic_0001>
module attributes {stable_mosaic.version = 11 : i64} {
  func.func @_rownorm_kernel(%arg0: i32, %arg1: memref<256x128xf32, #tpu.memory_space<vmem>>, %arg2: memref<256x128xf32, #tpu.memory_space<vmem>>) attributes {dimension_semantics = [#tpu.dimension_semantics<parallel>], iteration_bounds = array<i64: 1>, scalar_prefetch = 0 : i64, scratch_operands = 0 : i64, tpu.core_type = #tpu.core_type<tc>, window_params = [{transform_indices = @transform_0, window_bounds = array<i64: 256, 128>}, {transform_indices = @transform_1, window_bounds = array<i64: 256, 128>}]} {
    %c0 = arith.constant 0 : index
    %c0_0 = arith.constant 0 : index
    %0 = vector.load %arg1[%c0, %c0_0] : memref<256x128xf32, #tpu.memory_space<vmem>>, vector<256x128xf32>
    %1 = arith.mulf %0, %0 : vector<256x128xf32>
    %cst = arith.constant dense<0.000000e+00> : vector<256xf32>
    %2 = vector.multi_reduction <add>, %1, %cst [1] : vector<256x128xf32> to vector<256xf32>
    %3 = vector.shape_cast %2 : vector<256xf32> to vector<256x1xf32>
    %cst_1 = arith.constant 1.000000e-24 : f32
    %4 = vector.broadcast %cst_1 : f32 to vector<256x1xf32>
    %5 = arith.maximumf %3, %4 : vector<256x1xf32>
    %6 = math.rsqrt %5 : vector<256x1xf32>
    %7 = vector.broadcast %6 : vector<256x1xf32> to vector<256x128xf32>
    %8 = arith.mulf %0, %7 : vector<256x128xf32>
    %c0_2 = arith.constant 0 : index
    %c0_3 = arith.constant 0 : index
    %9 = vector.load %arg2[%c0_2, %c0_3] : memref<256x128xf32, #tpu.memory_space<vmem>>, vector<256x128xf32>
    tpu.vector_store %arg2[%c0_2, %c0_3], %8 {strides = array<i32>} : memref<256x128xf32, #tpu.memory_space<vmem>>, vector<256x128xf32>,
    return
  }
  func.func @transform_0(%arg0: i32) -> (i32, i32) {
    %c0_i32 = arith.constant 0 : i32
    %c0_i32_0 = arith.constant 0 : i32
    return %arg0, %c0_i32 : i32, i32
  }
  func.func @transform_1(%arg0: i32) -> (i32, i32) {
    %c0_i32 = arith.constant 0 : i32
    %c0_i32_0 = arith.constant 0 : i32
    return %arg0, %c0_i32 : i32, i32
  }
}

</mosaic_0001>

<llo_original>
// kernel: tpu_custom_call.1
$region0: #{tpu_custom_call.1}
  #allocation0 [shape = 'u32[]', space=smem, size = 0x4, offset = 0x4, fixed_abs, tag = 'smem constant byte address 0x4 - core index']
  #allocation1 [shape = 'u32[144,128]{1,0:T(1,128)}', space=vmem, size = 0x12000, scoped, tag = 'internal scratch']
  %s0 = inlined_call_operand.hbm [shape: f32[256,128], index: 0, kind: input, shape index: {}]
  %s1 = inlined_call_operand.hbm [shape: f32[256,128], index: 1, kind: output, shape index: {}]
  %s2 = sld [smem:[#allocation0]]
  $region18: #{tpu_custom_call.1} parent=0
    _
  %s4 = ssub.s32 1, %s2
  %s5 = scalar_select 0, %s4, %s2
  $region1: #{tpu_custom_call.1} parent=0
    #allocation2 [shape = 'u8[131072]{0}', space=vmem, size = 0x20000, scoped, tag = 'input window, operand 0, single buffered']
    #allocation3 [shape = 's32[1]{0}', space=sflag, size = 0x4, scoped, tag = 'scoped memory for tpu_custom_call.1']
    #allocation4 [shape = 's32[1]{0}', space=sflag, size = 0x4, scoped, tag = 'scoped memory for tpu_custom_call.1']
    #allocation5 [shape = 'u8[131072]{0}', space=vmem, size = 0x20000, scoped, tag = 'output window, operand 0, single buffered']
    %6 = vsyncpa [#allocation3], 0
    %7 = vsyncpa [#allocation4], 0
    // Predicated region
    $region2: #{tpu_custom_call.1} parent=1 // pred_check
      _
    $region3: #{tpu_custom_call.1} parent=1 // pred_check_branch
      %9 = sbr.rel (0) target = $region5
    $region4: #{tpu_custom_call.1} parent=1 // pred_region
      %s11 = ssub.s32 4096, 4096
      %12 = vsyncadd [#allocation3], %s11
      %s13 = sshll.u32 [#allocation2], 4
      %s14 = int_to_ptr.vmem [resolvable:$true] %s13
      %19 = dma.hbm_to_vmem [thread:$0]  %s0, 4096, %s14, [#allocation3], 128, 128, 8
    $region5: #{tpu_custom_call.1} parent=1 // pred_fallthru
      _
    // Predicated region
    $region6: #{tpu_custom_call.1} parent=1 // pred_check
      _
    $region7: #{tpu_custom_call.1} parent=1 // pred_check_branch
      %21 = sbr.rel (0) target = $region9
    $region8: #{tpu_custom_call.1} parent=1 // pred_region
      %22 = dma.done [#allocation3], 4096
    $region9: #{tpu_custom_call.1} parent=1 // pred_fallthru
      _
    %v23 = vld [vmem:[#allocation2] sm:$0xff]
    %v24 = vld [vmem:[#allocation2 + $0x8] sm:$0xff]
    %v25 = vld [vmem:[#allocation2 + $0x10] sm:$0xff]
    %v26 = vld [vmem:[#allocation2 + $0x18] sm:$0xff]
    %v27 = vld [vmem:[#allocation2 + $0x20] sm:$0xff]
    %v28 = vld [vmem:[#allocation2 + $0x28] sm:$0xff]
    %v29 = vld [vmem:[#allocation2 + $0x30] sm:$0xff]
    %v30 = vld [vmem:[#allocation2 + $0x38] sm:$0xff]
    %v31 = vld [vmem:[#allocation2 + $0x40] sm:$0xff]
    %v32 = vld [vmem:[#allocation2 + $0x48] sm:$0xff]
    %v33 = vld [vmem:[#allocation2 + $0x50] sm:$0xff]
    %v34 = vld [vmem:[#allocation2 + $0x58] sm:$0xff]
    %v35 = vld [vmem:[#allocation2 + $0x60] sm:$0xff]
    %v36 = vld [vmem:[#allocation2 + $0x68] sm:$0xff]
    %v37 = vld [vmem:[#allocation2 + $0x70] sm:$0xff]
    %v38 = vld [vmem:[#allocation2 + $0x78] sm:$0xff]
    %v39 = vld [vmem:[#allocation2 + $0x80] sm:$0xff]
    %v40 = vld [vmem:[#allocation2 + $0x88] sm:$0xff]
    %v41 = vld [vmem:[#allocation2 + $0x90] sm:$0xff]
    %v42 = vld [vmem:[#allocation2 + $0x98] sm:$0xff]
    %v43 = vld [vmem:[#allocation2 + $0xa0] sm:$0xff]
    %v44 = vld [vmem:[#allocation2 + $0xa8] sm:$0xff]
    %v45 = vld [vmem:[#allocation2 + $0xb0] sm:$0xff]
    %v46 = vld [vmem:[#allocation2 + $0xb8] sm:$0xff]
    %v47 = vld [vmem:[#allocation2 + $0xc0] sm:$0xff]
    %v48 = vld [vmem:[#allocation2 + $0xc8] sm:$0xff]
    %v49 = vld [vmem:[#allocation2 + $0xd0] sm:$0xff]
    %v50 = vld [vmem:[#allocation2 + $0xd8] sm:$0xff]
    %v51 = vld [vmem:[#allocation2 + $0xe0] sm:$0xff]
    %v52 = vld [vmem:[#allocation2 + $0xe8] sm:$0xff]
    %v53 = vld [vmem:[#allocation2 + $0xf0] sm:$0xff]
    %v54 = vld [vmem:[#allocation2 + $0xf8] sm:$0xff]
    %v55 = vmul.f32 %v23, %v23
    %v56 = vmul.f32 %v24, %v24
    %v57 = vmul.f32 %v25, %v25
    %v58 = vmul.f32 %v26, %v26
    %v59 = vmul.f32 %v27, %v27
    %v60 = vmul.f32 %v28, %v28
    %v61 = vmul.f32 %v29, %v29
    %v62 = vmul.f32 %v30, %v30
    %v63 = vmul.f32 %v31, %v31
    %v64 = vmul.f32 %v32, %v32
    %v65 = vmul.f32 %v33, %v33
    %v66 = vmul.f32 %v34, %v34
    %v67 = vmul.f32 %v35, %v35
    %v68 = vmul.f32 %v36, %v36
    %v69 = vmul.f32 %v37, %v37
    %v70 = vmul.f32 %v38, %v38
    %v71 = vmul.f32 %v39, %v39
    %v72 = vmul.f32 %v40, %v40
    %v73 = vmul.f32 %v41, %v41
    %v74 = vmul.f32 %v42, %v42
    %v75 = vmul.f32 %v43, %v43
    %v76 = vmul.f32 %v44, %v44
    %v77 = vmul.f32 %v45, %v45
    %v78 = vmul.f32 %v46, %v46
    %v79 = vmul.f32 %v47, %v47
    %v80 = vmul.f32 %v48, %v48
    %v81 = vmul.f32 %v49, %v49
    %v82 = vmul.f32 %v50, %v50
    %v83 = vmul.f32 %v51, %v51
    %v84 = vmul.f32 %v52, %v52
    %v85 = vmul.f32 %v53, %v53
    %v86 = vmul.f32 %v54, %v54
    %87 = vadd.xlane.f32.xlu0 %v55
    %v88 = vpop.xlane.xlu0 %87
    %89 = vadd.xlane.f32.xlu0 %v56
    %v90 = vpop.xlane.xlu0 %89
    %91 = vadd.xlane.f32.xlu0 %v57
    %v92 = vpop.xlane.xlu0 %91
    %93 = vadd.xlane.f32.xlu0 %v58
    %v94 = vpop.xlane.xlu0 %93
    %95 = vadd.xlane.f32.xlu0 %v59
    %v96 = vpop.xlane.xlu0 %95
    %97 = vadd.xlane.f32.xlu0 %v60
    %v98 = vpop.xlane.xlu0 %97
    %99 = vadd.xlane.f32.xlu0 %v61
    %v100 = vpop.xlane.xlu0 %99
    %101 = vadd.xlane.f32.xlu0 %v62
    %v102 = vpop.xlane.xlu0 %101
    %103 = vadd.xlane.f32.xlu0 %v63
    %v104 = vpop.xlane.xlu0 %103
    %105 = vadd.xlane.f32.xlu0 %v64
    %v106 = vpop.xlane.xlu0 %105
    %107 = vadd.xlane.f32.xlu0 %v65
    %v108 = vpop.xlane.xlu0 %107
    %109 = vadd.xlane.f32.xlu0 %v66
    %v110 = vpop.xlane.xlu0 %109
    %111 = vadd.xlane.f32.xlu0 %v67
    %v112 = vpop.xlane.xlu0 %111
    %113 = vadd.xlane.f32.xlu0 %v68
    %v114 = vpop.xlane.xlu0 %113
    %115 = vadd.xlane.f32.xlu0 %v69
    %v116 = vpop.xlane.xlu0 %115
    %117 = vadd.xlane.f32.xlu0 %v70
    %v118 = vpop.xlane.xlu0 %117
    %119 = vadd.xlane.f32.xlu0 %v71
    %v120 = vpop.xlane.xlu0 %119
    %121 = vadd.xlane.f32.xlu0 %v72
    %v122 = vpop.xlane.xlu0 %121
    %123 = vadd.xlane.f32.xlu0 %v73
    %v124 = vpop.xlane.xlu0 %123
    %125 = vadd.xlane.f32.xlu0 %v74
    %v126 = vpop.xlane.xlu0 %125
    %127 = vadd.xlane.f32.xlu0 %v75
    %v128 = vpop.xlane.xlu0 %127
    %129 = vadd.xlane.f32.xlu0 %v76
    %v130 = vpop.xlane.xlu0 %129
    %131 = vadd.xlane.f32.xlu0 %v77
    %v132 = vpop.xlane.xlu0 %131
    %133 = vadd.xlane.f32.xlu0 %v78
    %v134 = vpop.xlane.xlu0 %133
    %135 = vadd.xlane.f32.xlu0 %v79
    %v136 = vpop.xlane.xlu0 %135
    %137 = vadd.xlane.f32.xlu0 %v80
    %v138 = vpop.xlane.xlu0 %137
    %139 = vadd.xlane.f32.xlu0 %v81
    %v140 = vpop.xlane.xlu0 %139
    %141 = vadd.xlane.f32.xlu0 %v82
    %v142 = vpop.xlane.xlu0 %141
    %143 = vadd.xlane.f32.xlu0 %v83
    %v144 = vpop.xlane.xlu0 %143
    %145 = vadd.xlane.f32.xlu0 %v84
    %v146 = vpop.xlane.xlu0 %145
    %147 = vadd.xlane.f32.xlu0 %v85
    %v148 = vpop.xlane.xlu0 %147
    %149 = vadd.xlane.f32.xlu0 %v86
    %v150 = vpop.xlane.xlu0 %149
    %v151 = vmax.f32 %v88, 1e-24
    %v152 = vmax.f32 %v90, 1e-24
    %v153 = vmax.f32 %v92, 1e-24
    %v154 = vmax.f32 %v94, 1e-24
    %v155 = vmax.f32 %v96, 1e-24
    %v156 = vmax.f32 %v98, 1e-24
    %v157 = vmax.f32 %v100, 1e-24
    %v158 = vmax.f32 %v102, 1e-24
    %v159 = vmax.f32 %v104, 1e-24
    %v160 = vmax.f32 %v106, 1e-24
    %v161 = vmax.f32 %v108, 1e-24
    %v162 = vmax.f32 %v110, 1e-24
    %v163 = vmax.f32 %v112, 1e-24
    %v164 = vmax.f32 %v114, 1e-24
    %v165 = vmax.f32 %v116, 1e-24
    %v166 = vmax.f32 %v118, 1e-24
    %v167 = vmax.f32 %v120, 1e-24
    %v168 = vmax.f32 %v122, 1e-24
    %v169 = vmax.f32 %v124, 1e-24
    %v170 = vmax.f32 %v126, 1e-24
    %v171 = vmax.f32 %v128, 1e-24
    %v172 = vmax.f32 %v130, 1e-24
    %v173 = vmax.f32 %v132, 1e-24
    %v174 = vmax.f32 %v134, 1e-24
    %v175 = vmax.f32 %v136, 1e-24
    %v176 = vmax.f32 %v138, 1e-24
    %v177 = vmax.f32 %v140, 1e-24
    %v178 = vmax.f32 %v142, 1e-24
    %v179 = vmax.f32 %v144, 1e-24
    %v180 = vmax.f32 %v146, 1e-24
    %v181 = vmax.f32 %v148, 1e-24
    %v182 = vmax.f32 %v150, 1e-24
    %v183 = vrsqrt.pop %v151
    %v184 = vrsqrt.pop %v152
    %v185 = vrsqrt.pop %v153
    %v186 = vrsqrt.pop %v154
    %v187 = vrsqrt.pop %v155
    %v188 = vrsqrt.pop %v156
    %v189 = vrsqrt.pop %v157
    %v190 = vrsqrt.pop %v158
    %v191 = vrsqrt.pop %v159
    %v192 = vrsqrt.pop %v160
    %v193 = vrsqrt.pop %v161
    %v194 = vrsqrt.pop %v162
    %v195 = vrsqrt.pop %v163
    %v196 = vrsqrt.pop %v164
    %v197 = vrsqrt.pop %v165
    %v198 = vrsqrt.pop %v166
    %v199 = vrsqrt.pop %v167
    %v200 = vrsqrt.pop %v168
    %v201 = vrsqrt.pop %v169
    %v202 = vrsqrt.pop %v170
    %v203 = vrsqrt.pop %v171
    %v204 = vrsqrt.pop %v172
    %v205 = vrsqrt.pop %v173
    %v206 = vrsqrt.pop %v174
    %v207 = vrsqrt.pop %v175
    %v208 = vrsqrt.pop %v176
    %v209 = vrsqrt.pop %v177
    %v210 = vrsqrt.pop %v178
    %v211 = vrsqrt.pop %v179
    %v212 = vrsqrt.pop %v180
    %v213 = vrsqrt.pop %v181
    %v214 = vrsqrt.pop %v182
    %v215 = vmul.f32 %v23, %v183
    %v216 = vmul.f32 %v24, %v184
    %v217 = vmul.f32 %v25, %v185
    %v218 = vmul.f32 %v26, %v186
    %v219 = vmul.f32 %v27, %v187
    %v220 = vmul.f32 %v28, %v188
    %v221 = vmul.f32 %v29, %v189
    %v222 = vmul.f32 %v30, %v190
    %v223 = vmul.f32 %v31, %v191
    %v224 = vmul.f32 %v32, %v192
    %v225 = vmul.f32 %v33, %v193
    %v226 = vmul.f32 %v34, %v194
    %v227 = vmul.f32 %v35, %v195
    %v228 = vmul.f32 %v36, %v196
    %v229 = vmul.f32 %v37, %v197
    %v230 = vmul.f32 %v38, %v198
    %v231 = vmul.f32 %v39, %v199
    %v232 = vmul.f32 %v40, %v200
    %v233 = vmul.f32 %v41, %v201
    %v234 = vmul.f32 %v42, %v202
    %v235 = vmul.f32 %v43, %v203
    %v236 = vmul.f32 %v44, %v204
    %v237 = vmul.f32 %v45, %v205
    %v238 = vmul.f32 %v46, %v206
    %v239 = vmul.f32 %v47, %v207
    %v240 = vmul.f32 %v48, %v208
    %v241 = vmul.f32 %v49, %v209
    %v242 = vmul.f32 %v50, %v210
    %v243 = vmul.f32 %v51, %v211
    %v244 = vmul.f32 %v52, %v212
    %v245 = vmul.f32 %v53, %v213
    %v246 = vmul.f32 %v54, %v214
    %247 = vst [vmem:[#allocation5] sm:$0xff] %v215
    %248 = vst [vmem:[#allocation5 + $0x8] sm:$0xff] %v216
    %249 = vst [vmem:[#allocation5 + $0x10] sm:$0xff] %v217
    %250 = vst [vmem:[#allocation5 + $0x18] sm:$0xff] %v218
    %251 = vst [vmem:[#allocation5 + $0x20] sm:$0xff] %v219
    %252 = vst [vmem:[#allocation5 + $0x28] sm:$0xff] %v220
    %253 = vst [vmem:[#allocation5 + $0x30] sm:$0xff] %v221
    %254 = vst [vmem:[#allocation5 + $0x38] sm:$0xff] %v222
    %255 = vst [vmem:[#allocation5 + $0x40] sm:$0xff] %v223
    %256 = vst [vmem:[#allocation5 + $0x48] sm:$0xff] %v224
    %257 = vst [vmem:[#allocation5 + $0x50] sm:$0xff] %v225
    %258 = vst [vmem:[#allocation5 + $0x58] sm:$0xff] %v226
    %259 = vst [vmem:[#allocation5 + $0x60] sm:$0xff] %v227
    %260 = vst [vmem:[#allocation5 + $0x68] sm:$0xff] %v228
    %261 = vst [vmem:[#allocation5 + $0x70] sm:$0xff] %v229
    %262 = vst [vmem:[#allocation5 + $0x78] sm:$0xff] %v230
    %263 = vst [vmem:[#allocation5 + $0x80] sm:$0xff] %v231
    %264 = vst [vmem:[#allocation5 + $0x88] sm:$0xff] %v232
    %265 = vst [vmem:[#allocation5 + $0x90] sm:$0xff] %v233
    %266 = vst [vmem:[#allocation5 + $0x98] sm:$0xff] %v234
    %267 = vst [vmem:[#allocation5 + $0xa0] sm:$0xff] %v235
    %268 = vst [vmem:[#allocation5 + $0xa8] sm:$0xff] %v236
    %269 = vst [vmem:[#allocation5 + $0xb0] sm:$0xff] %v237
    %270 = vst [vmem:[#allocation5 + $0xb8] sm:$0xff] %v238
    %271 = vst [vmem:[#allocation5 + $0xc0] sm:$0xff] %v239
    %272 = vst [vmem:[#allocation5 + $0xc8] sm:$0xff] %v240
    %273 = vst [vmem:[#allocation5 + $0xd0] sm:$0xff] %v241
    %274 = vst [vmem:[#allocation5 + $0xd8] sm:$0xff] %v242
    %275 = vst [vmem:[#allocation5 + $0xe0] sm:$0xff] %v243
    %276 = vst [vmem:[#allocation5 + $0xe8] sm:$0xff] %v244
    %277 = vst [vmem:[#allocation5 + $0xf0] sm:$0xff] %v245
    %278 = vst [vmem:[#allocation5 + $0xf8] sm:$0xff] %v246
    // Predicated region
    $region10: #{tpu_custom_call.1} parent=1 // pred_check
      _
    $region11: #{tpu_custom_call.1} parent=1 // pred_check_branch
      %280 = sbr.rel (0) target = $region13
    $region12: #{tpu_custom_call.1} parent=1 // pred_region
      %s282 = ssub.s32 4096, 4096
      %283 = vsyncadd [#allocation4], %s282
      %s284 = sshll.u32 [#allocation5], 4
      %s285 = int_to_ptr.vmem [resolvable:$true] %s284
      %290 = dma.vmem_to_hbm [thread:$0]  %s285, 4096, %s1, [#allocation4], 128, 128, 8
    $region13: #{tpu_custom_call.1} parent=1 // pred_fallthru
      _
    // Predicated region
    $region14: #{tpu_custom_call.1} parent=1 // pred_check
      _
    $region15: #{tpu_custom_call.1} parent=1 // pred_check_branch
      %292 = sbr.rel (0) target = $region17
    $region16: #{tpu_custom_call.1} parent=1 // pred_region
      %293 = dma.done [#allocation4], 4096
    $region17: #{tpu_custom_call.1} parent=1 // pred_fallthru
      _
    %294 = vsyncpa [#allocation3], 1
    %295 = vsyncpa [#allocation4], 1

</llo_original>
